<compile_context>
chip_gen: v6e
topology: v6e:2x2x1
jax: 0.10.0
libtpu: 0.0.40
codegen_flags: <defaults>
</compile_context>

<pallas_src>
import functools

import jax
import jax.numpy as jnp
from jax.experimental import pallas as pl
from jax.experimental.pallas import tpu as pltpu


def pinn_kernel(xyt_ref, w_in_ref, b_in_ref, w_mid_ref, b_mid_ref,
                w_out_ref, b_out_ref, out_ref, *, num_chains):
    tile_n = xyt_ref.shape[1]
    half = tile_n // num_chains            # multiple of 128 by construction

    wi = w_in_ref[...]                     # (H, 3)
    bi = b_in_ref[...]                     # (H, 1)
    num_mid = w_mid_ref.shape[0]           # trace-time constant

    # ---- Input layer on the VPU: h = tanh(W_in @ [x;y;t] + b_in) ----------
    # Independent per-column-half chains (two chains keep EUP + MXU busy).
    hs = []
    for c in range(num_chains):
        lo = c * half
        x_row = xyt_ref[0:1, lo:lo + half]   # (1, half)
        y_row = xyt_ref[1:2, lo:lo + half]
        t_row = xyt_ref[2:3, lo:lo + half]
        h = jnp.tanh(wi[:, 0:1] * x_row
                     + wi[:, 1:2] * y_row
                     + wi[:, 2:3] * t_row
                     + bi)                    # (H, half)
        hs.append(h)

    # ---- Hidden layers on the MXU, statically unrolled, chains interleaved --
    for i in range(num_mid):
        w = w_mid_ref[i]                      # (H, H)
        b = b_mid_ref[i]                      # (H, 1)
        hs = [jnp.tanh(jnp.dot(w, h, preferred_element_type=jnp.float32) + b)
              for h in hs]

    # ---- Output layer: (1, H) @ (H, half) + scalar bias (SMEM) --------------
    wo = w_out_ref[...]                       # (1, H)
    bo = b_out_ref[0, 0]
    for c in range(num_chains):
        lo = c * half
        out_ref[0:1, lo:lo + half] = (
            jnp.dot(wo, hs[c], preferred_element_type=jnp.float32) + bo)


def _choose_tile_n(n, target=8192):
    """Lane-aligned batch tile: clamp to round_up(N,128); prefer >=2 tiles."""
    n128 = ((n + 127) // 128) * 128
    tile = min(target, n128)
    # If one tile would cover the whole batch and there are >= 256 lanes,
    # split into two tiles so the parallel axis can use both v7x TensorCores.
    if tile == n128 and n128 >= 256:
        tile = ((n128 // 2 + 127) // 128) * 128
    return max(tile, 128)


def _vmem_budget_bytes(tile_n, hidden, num_mid):
    f32 = 4
    streamed = 2 * (3 * tile_n + tile_n) * f32                     # dbl-buffered I/O
    weights = 2 * (3 * hidden + hidden                             # W_in, b_in
                   + num_mid * (hidden * hidden + hidden)          # mid
                   + hidden + 1) * f32                             # W_out, b_out
    activ = 3 * hidden * tile_n * f32                              # h + temps headroom
    return streamed + weights + activ


def pinn_forward(x, y, t, params, *, tile_n=None):
    """Pallas implementation of PINN.forward(x, y, t).  x, y, t: (N, 1)."""
    w_in, b_in, w_mid, b_mid, w_out, b_out = params
    N = x.shape[0]
    H = w_in.shape[0]
    num_mid = w_mid.shape[0]

    if tile_n is None:
        tile_n = _choose_tile_n(N)
    tile_n = max(128, ((tile_n + 127) // 128) * 128)

    n_tiles = pl.cdiv(N, tile_n)
    n_pad = n_tiles * tile_n
    num_chains = 2 if tile_n % 256 == 0 else 1

    # Stack x,y,t into one (3, N) slab: a single streamed DMA per grid step.
    xyt = jnp.concatenate(
        [x.astype(jnp.float32).reshape(1, N),
         y.astype(jnp.float32).reshape(1, N),
         t.astype(jnp.float32).reshape(1, N)], axis=0)              # (3, N)
    if n_pad != N:
        xyt = jnp.pad(xyt, ((0, 0), (0, n_pad - N)))

    # Streamed array: walk the lane axis with the grid.
    xyt_spec = pl.BlockSpec((3, tile_n), lambda i: (0, i))

    # Weights: whole-array blocks, constant block index -> VMEM-resident.
    def resident(a):
        nd = a.ndim
        return pl.BlockSpec(a.shape, lambda i, nd=nd: (0,) * nd)

    in_specs = [
        xyt_spec,
        resident(w_in), resident(b_in),
        resident(w_mid), resident(b_mid),
        resident(w_out),
        pl.BlockSpec(memory_space=pltpu.MemorySpace.SMEM),          # (1,1) out bias
    ]
    out_spec = pl.BlockSpec((1, tile_n), lambda i: (0, i))

    # Explicit VMEM budget (never below the 32 MiB default; cap under v7x's
    # 64 MiB physical).  Resident weights are negligible at H=32.
    budget = _vmem_budget_bytes(tile_n, H, num_mid)
    vmem_limit = int(min(48 * 1024 * 1024,
                         max(32 * 1024 * 1024, 2 * budget)))

    kernel = functools.partial(pinn_kernel, num_chains=num_chains)

    out_row = pl.pallas_call(
        kernel,
        out_shape=jax.ShapeDtypeStruct((1, n_pad), jnp.float32),
        grid_spec=pltpu.PrefetchScalarGridSpec(
            num_scalar_prefetch=0,
            grid=(n_tiles,),
            in_specs=in_specs,
            out_specs=out_spec,
        ),
        compiler_params=pltpu.CompilerParams(
            dimension_semantics=("parallel",),
            vmem_limit_bytes=vmem_limit),
    )(xyt, w_in, b_in, w_mid, b_mid, w_out, b_out)

    return out_row[:, :N].reshape(N, 1)


def init_params(key, layers, neurons_per_layer):
    """PyTorch-style Linear init, stored in (out, in) column convention."""
    num_mid = layers - 1
    keys = jax.random.split(key, 2 * (num_mid + 2))

    def linear(kw, kb, fan_in, fan_out):
        bound = 1.0 / float(fan_in) ** 0.5
        w = jax.random.uniform(kw, (fan_out, fan_in), jnp.float32, -bound, bound)
        b = jax.random.uniform(kb, (fan_out, 1), jnp.float32, -bound, bound)
        return w, b

    w_in, b_in = linear(keys[0], keys[1], 3, neurons_per_layer)

    w_mids, b_mids = [], []
    for i in range(num_mid):
        w, b = linear(keys[2 + 2 * i], keys[3 + 2 * i],
                      neurons_per_layer, neurons_per_layer)
        w_mids.append(w)
        b_mids.append(b)
    w_mid = jnp.stack(w_mids)   # (num_mid, H, H)
    b_mid = jnp.stack(b_mids)   # (num_mid, H, 1)

    w_out, b_out = linear(keys[2 + 2 * num_mid], keys[3 + 2 * num_mid],
                          neurons_per_layer, 1)     # (1, H), (1, 1)
    return w_in, b_in, w_mid, b_mid, w_out, b_out


def pinn_reference(x, y, t, params):
    """Pure-JAX reference of the PyTorch forward, for correctness checking."""
    w_in, b_in, w_mid, b_mid, w_out, b_out = params
    xyt = jnp.concatenate([x, y, t], axis=-1).astype(jnp.float32).T   # (3, N)
    h = jnp.tanh(w_in @ xyt + b_in)
    for i in range(w_mid.shape[0]):
        h = jnp.tanh(w_mid[i] @ h + b_mid[i])
    return (w_out @ h + b_out).T                                      # (N, 1)


if __name__ == "__main__":
    layers = 3            # -> 2 middle Linear(H, H) layers
    hidden = 32
    batch = 8

    key = jax.random.PRNGKey(0)
    k_params, kx, ky, kt = jax.random.split(key, 4)

    params = init_params(k_params, layers, hidden)
    x = jax.random.normal(kx, (batch, 1), jnp.float32)
    y = jax.random.normal(ky, (batch, 1), jnp.float32)
    t = jax.random.normal(kt, (batch, 1), jnp.float32)

    # Small-batch path (tile_n clamps to 128, single chain).
    out = pinn_forward(x, y, t, params)
    out = jax.block_until_ready(out)
    ref = pinn_reference(x, y, t, params)
    assert out.shape == (batch, 1)
    assert jnp.allclose(out, ref, atol=1e-5, rtol=1e-5)

    # Larger batch exercises the multi-tile / two-chain path.
    big = 1024
    kx2, ky2, kt2 = jax.random.split(jax.random.PRNGKey(1), 3)
    xb = jax.random.normal(kx2, (big, 1), jnp.float32)
    yb = jax.random.normal(ky2, (big, 1), jnp.float32)
    tb = jax.random.normal(kt2, (big, 1), jnp.float32)
    out_b = jax.block_until_ready(pinn_forward(xb, yb, tb, params))
    ref_b = pinn_reference(xb, yb, tb, params)
    assert out_b.shape == (big, 1)
    assert jnp.allclose(out_b, ref_b, atol=1e-5, rtol=1e-5)

    print("KERNEL_OK")
</pallas_src>

<mosaic_0001>
module attributes {stable_mosaic.version = 11 : i64} {
  func.func @pinn_kernel(%arg0: i32, %arg1: memref<3x128xf32, #tpu.memory_space<vmem>>, %arg2: memref<32x3xf32, #tpu.memory_space<vmem>>, %arg3: memref<32x1xf32, #tpu.memory_space<vmem>>, %arg4: memref<2x32x32xf32, #tpu.memory_space<vmem>>, %arg5: memref<2x32x1xf32, #tpu.memory_space<vmem>>, %arg6: memref<1x32xf32, #tpu.memory_space<vmem>>, %arg7: memref<1x1xf32, #tpu.memory_space<smem>>, %arg8: memref<1x128xf32, #tpu.memory_space<vmem>>) attributes {dimension_semantics = [#tpu.dimension_semantics<parallel>], iteration_bounds = array<i64: 1>, scalar_prefetch = 0 : i64, scratch_operands = 0 : i64, tpu.core_type = #tpu.core_type<tc>, window_params = [{transform_indices = @transform_0, window_bounds = array<i64: 3, 128>}, {pipeline_mode = #tpu.pipeline_mode<synchronous>, transform_indices = @transform_1, window_bounds = array<i64: 32, 3>}, {pipeline_mode = #tpu.pipeline_mode<synchronous>, transform_indices = @transform_2, window_bounds = array<i64: 32, 1>}, {pipeline_mode = #tpu.pipeline_mode<synchronous>, transform_indices = @transform_3, window_bounds = array<i64: 2, 32, 32>}, {pipeline_mode = #tpu.pipeline_mode<synchronous>, transform_indices = @transform_4, window_bounds = array<i64: 2, 32, 1>}, {pipeline_mode = #tpu.pipeline_mode<synchronous>, transform_indices = @transform_5, window_bounds = array<i64: 1, 32>}, {transform_indices = @transform_6, window_bounds = array<i64: 1, 1>}, {transform_indices = @transform_7, window_bounds = array<i64: 1, 128>}]} {
    %c0 = arith.constant 0 : index
    %c0_0 = arith.constant 0 : index
    %0 = vector.load %arg2[%c0, %c0_0] : memref<32x3xf32, #tpu.memory_space<vmem>>, vector<32x3xf32>
    %c0_1 = arith.constant 0 : index
    %c0_2 = arith.constant 0 : index
    %1 = vector.load %arg3[%c0_1, %c0_2] : memref<32x1xf32, #tpu.memory_space<vmem>>, vector<32x1xf32>
    %c0_3 = arith.constant 0 : index
    %c0_4 = arith.constant 0 : index
    %2 = vector.load %arg1[%c0_3, %c0_4] : memref<3x128xf32, #tpu.memory_space<vmem>>, vector<1x128xf32>
    %c1 = arith.constant 1 : index
    %c0_5 = arith.constant 0 : index
    %3 = vector.load %arg1[%c1, %c0_5] : memref<3x128xf32, #tpu.memory_space<vmem>>, vector<1x128xf32>
    %c2 = arith.constant 2 : index
    %c0_6 = arith.constant 0 : index
    %4 = vector.load %arg1[%c2, %c0_6] : memref<3x128xf32, #tpu.memory_space<vmem>>, vector<1x128xf32>
    %5 = vector.extract_strided_slice %0 {offsets = [0, 0], sizes = [32, 1], strides = [1, 1]} : vector<32x3xf32> to vector<32x1xf32>
    %6 = vector.broadcast %5 : vector<32x1xf32> to vector<32x128xf32>
    %7 = vector.broadcast %2 : vector<1x128xf32> to vector<32x128xf32>
    %8 = arith.mulf %6, %7 : vector<32x128xf32>
    %9 = vector.extract_strided_slice %0 {offsets = [0, 1], sizes = [32, 1], strides = [1, 1]} : vector<32x3xf32> to vector<32x1xf32>
    %10 = vector.broadcast %9 : vector<32x1xf32> to vector<32x128xf32>
    %11 = vector.broadcast %3 : vector<1x128xf32> to vector<32x128xf32>
    %12 = arith.mulf %10, %11 : vector<32x128xf32>
    %13 = arith.addf %8, %12 : vector<32x128xf32>
    %14 = vector.extract_strided_slice %0 {offsets = [0, 2], sizes = [32, 1], strides = [1, 1]} : vector<32x3xf32> to vector<32x1xf32>
    %15 = vector.broadcast %14 : vector<32x1xf32> to vector<32x128xf32>
    %16 = vector.broadcast %4 : vector<1x128xf32> to vector<32x128xf32>
    %17 = arith.mulf %15, %16 : vector<32x128xf32>
    %18 = arith.addf %13, %17 : vector<32x128xf32>
    %19 = vector.broadcast %1 : vector<32x1xf32> to vector<32x128xf32>
    %20 = arith.addf %18, %19 : vector<32x128xf32>
    %21 = math.tanh %20 : vector<32x128xf32>
    %c0_7 = arith.constant 0 : index
    %c0_8 = arith.constant 0 : index
    %c0_9 = arith.constant 0 : index
    %22 = vector.load %arg4[%c0_7, %c0_8, %c0_9] : memref<2x32x32xf32, #tpu.memory_space<vmem>>, vector<1x32x32xf32>
    %23 = vector.shape_cast %22 : vector<1x32x32xf32> to vector<32x32xf32>
    %c0_10 = arith.constant 0 : index
    %c0_11 = arith.constant 0 : index
    %c0_12 = arith.constant 0 : index
    %24 = vector.load %arg5[%c0_10, %c0_11, %c0_12] : memref<2x32x1xf32, #tpu.memory_space<vmem>>, vector<1x32x1xf32>
    %25 = vector.shape_cast %24 : vector<1x32x1xf32> to vector<32x1xf32>
    %cst = arith.constant dense<0.000000e+00> : vector<32x128xf32>
    %26 = tpu.matmul %23, %21, %cst {dimension_numbers = #tpu.dot_dimension_numbers<[1], [0], [0], [1], [0, 0, 1, 1], [], []>} : vector<32x32xf32>, vector<32x128xf32>, vector<32x128xf32> -> vector<32x128xf32>
    %27 = vector.broadcast %25 : vector<32x1xf32> to vector<32x128xf32>
    %28 = arith.addf %26, %27 : vector<32x128xf32>
    %29 = math.tanh %28 : vector<32x128xf32>
    %c1_13 = arith.constant 1 : index
    %c0_14 = arith.constant 0 : index
    %c0_15 = arith.constant 0 : index
    %30 = vector.load %arg4[%c1_13, %c0_14, %c0_15] : memref<2x32x32xf32, #tpu.memory_space<vmem>>, vector<1x32x32xf32>
    %31 = vector.shape_cast %30 : vector<1x32x32xf32> to vector<32x32xf32>
    %c1_16 = arith.constant 1 : index
    %c0_17 = arith.constant 0 : index
    %c0_18 = arith.constant 0 : index
    %32 = vector.load %arg5[%c1_16, %c0_17, %c0_18] : memref<2x32x1xf32, #tpu.memory_space<vmem>>, vector<1x32x1xf32>
    %33 = vector.shape_cast %32 : vector<1x32x1xf32> to vector<32x1xf32>
    %cst_19 = arith.constant dense<0.000000e+00> : vector<32x128xf32>
    %34 = tpu.matmul %31, %29, %cst_19 {dimension_numbers = #tpu.dot_dimension_numbers<[1], [0], [0], [1], [0, 0, 1, 1], [], []>} : vector<32x32xf32>, vector<32x128xf32>, vector<32x128xf32> -> vector<32x128xf32>
    %35 = vector.broadcast %33 : vector<32x1xf32> to vector<32x128xf32>
    %36 = arith.addf %34, %35 : vector<32x128xf32>
    %37 = math.tanh %36 : vector<32x128xf32>
    %c0_20 = arith.constant 0 : index
    %c0_21 = arith.constant 0 : index
    %38 = vector.load %arg6[%c0_20, %c0_21] : memref<1x32xf32, #tpu.memory_space<vmem>>, vector<1x32xf32>
    %c0_22 = arith.constant 0 : index
    %c0_23 = arith.constant 0 : index
    %39 = memref.load %arg7[%c0_22, %c0_23] : memref<1x1xf32, #tpu.memory_space<smem>>
    %cst_24 = arith.constant dense<0.000000e+00> : vector<1x128xf32>
    %40 = tpu.matmul %38, %37, %cst_24 {dimension_numbers = #tpu.dot_dimension_numbers<[1], [0], [0], [1], [0, 0, 1, 1], [], []>} : vector<1x32xf32>, vector<32x128xf32>, vector<1x128xf32> -> vector<1x128xf32>
    %41 = vector.broadcast %39 : f32 to vector<1x128xf32>
    %42 = arith.addf %40, %41 : vector<1x128xf32>
    %c0_25 = arith.constant 0 : index
    %c0_26 = arith.constant 0 : index
    %43 = vector.load %arg8[%c0_25, %c0_26] : memref<1x128xf32, #tpu.memory_space<vmem>>, vector<1x128xf32>
    tpu.vector_store %arg8[%c0_25, %c0_26], %42 {strides = array<i32>} : memref<1x128xf32, #tpu.memory_space<vmem>>, vector<1x128xf32>,
    return
  }
  func.func @transform_0(%arg0: i32) -> (i32, i32) {
    %c0_i32 = arith.constant 0 : i32
    %c0_i32_0 = arith.constant 0 : i32
    return %c0_i32, %arg0 : i32, i32
  }
  func.func @transform_1(%arg0: i32) -> (i32, i32) {
    %c0_i32 = arith.constant 0 : i32
    %c0_i32_0 = arith.constant 0 : i32
    %c0_i32_1 = arith.constant 0 : i32
    return %c0_i32, %c0_i32_0 : i32, i32
  }
  func.func @transform_2(%arg0: i32) -> (i32, i32) {
    %c0_i32 = arith.constant 0 : i32
    %c0_i32_0 = arith.constant 0 : i32
    %c0_i32_1 = arith.constant 0 : i32
    return %c0_i32, %c0_i32_0 : i32, i32
  }
  func.func @transform_3(%arg0: i32) -> (i32, i32, i32) {
    %c0_i32 = arith.constant 0 : i32
    %c0_i32_0 = arith.constant 0 : i32
    %c0_i32_1 = arith.constant 0 : i32
    %c0_i32_2 = arith.constant 0 : i32
    return %c0_i32, %c0_i32_0, %c0_i32_1 : i32, i32, i32
  }
  func.func @transform_4(%arg0: i32) -> (i32, i32, i32) {
    %c0_i32 = arith.constant 0 : i32
    %c0_i32_0 = arith.constant 0 : i32
    %c0_i32_1 = arith.constant 0 : i32
    %c0_i32_2 = arith.constant 0 : i32
    return %c0_i32, %c0_i32_0, %c0_i32_1 : i32, i32, i32
  }
  func.func @transform_5(%arg0: i32) -> (i32, i32) {
    %c0_i32 = arith.constant 0 : i32
    %c0_i32_0 = arith.constant 0 : i32
    %c0_i32_1 = arith.constant 0 : i32
    return %c0_i32, %c0_i32_0 : i32, i32
  }
  func.func @transform_6(%arg0: i32) -> (i32, i32) {
    %c0_i32 = arith.constant 0 : i32
    %c0_i32_0 = arith.constant 0 : i32
    %c0_i32_1 = arith.constant 0 : i32
    return %c0_i32, %c0_i32_0 : i32, i32
  }
  func.func @transform_7(%arg0: i32) -> (i32, i32) {
    %c0_i32 = arith.constant 0 : i32
    %c0_i32_0 = arith.constant 0 : i32
    return %c0_i32, %arg0 : i32, i32
  }
}

</mosaic_0001>

<llo_original>
// kernel: tpu_custom_call.1
$region0: #{tpu_custom_call.1}
  #allocation0 [shape = 'u32[]', space=smem, size = 0x4, offset = 0x4, fixed_abs, tag = 'smem constant byte address 0x4 - core index']
  #allocation1 [shape = 'u32[144,128]{1,0:T(1,128)}', space=vmem, size = 0x12000, scoped, tag = 'internal scratch']
  #allocation2 [shape = 'f32[1,1]{1,0:T(1,128)S(6)}', space=smem, size = 0x200, scoped, tag = 'scoped memory for tpu_custom_call.1']
  %s0 = inlined_call_operand.vmem [shape: f32[3,128], index: 0, kind: input, shape index: {}]
  %s1 = inlined_call_operand.vmem [shape: f32[32,3], index: 1, kind: input, shape index: {}]
  %s2 = inlined_call_operand.vmem [shape: f32[32,1], index: 2, kind: input, shape index: {}]
  %s3 = inlined_call_operand.vmem [shape: f32[2,32,32], index: 3, kind: input, shape index: {}]
  %s4 = inlined_call_operand.vmem [shape: f32[2,32,1], index: 4, kind: input, shape index: {}]
  %s5 = inlined_call_operand.vmem [shape: f32[1,32], index: 5, kind: input, shape index: {}]
  %s6 = inlined_call_operand.<no memory space> [shape: f32[1,1], index: 6, kind: input, shape index: {}]
  %s7 = inlined_call_operand.hbm [shape: f32[1,128], index: 7, kind: output, shape index: {}]
  %s8 = sld [smem:[#allocation0]]
  $region38: #{tpu_custom_call.1} parent=0
    _
  %s10 = ssub.s32 1, %s8
  %s11 = scalar_select 0, %s10, %s8
  %12 = sst [smem:[#allocation2]] %s6
  $region1: #{tpu_custom_call.1} parent=0
    #allocation3 [shape = 'u8[512]{0}', space=vmem, size = 0x400, scoped, tag = 'output window, operand 0, single buffered']
    #allocation4 [shape = 's32[1]{0}', space=sflag, size = 0x4, scoped, tag = 'scoped memory for tpu_custom_call.1']
    %13 = vsyncpa [#allocation4], 0
    // Predicated region
    $region2: #{tpu_custom_call.1} parent=1 // pred_check
      _
    $region3: #{tpu_custom_call.1} parent=1 // pred_check_branch
      %15 = sbr.rel (0) target = $region5
    $region4: #{tpu_custom_call.1} parent=1 // pred_region
      _
    $region5: #{tpu_custom_call.1} parent=1 // pred_fallthru
      _
    // Predicated region
    $region6: #{tpu_custom_call.1} parent=1 // pred_check
      _
    $region7: #{tpu_custom_call.1} parent=1 // pred_check_branch
      %17 = sbr.rel (0) target = $region9
    $region8: #{tpu_custom_call.1} parent=1 // pred_region
      _
    $region9: #{tpu_custom_call.1} parent=1 // pred_fallthru
      _
    // Predicated region
    $region10: #{tpu_custom_call.1} parent=1 // pred_check
      _
    $region11: #{tpu_custom_call.1} parent=1 // pred_check_branch
      %19 = sbr.rel (0) target = $region13
    $region12: #{tpu_custom_call.1} parent=1 // pred_region
      _
    $region13: #{tpu_custom_call.1} parent=1 // pred_fallthru
      _
    // Predicated region
    $region14: #{tpu_custom_call.1} parent=1 // pred_check
      _
    $region15: #{tpu_custom_call.1} parent=1 // pred_check_branch
      %21 = sbr.rel (0) target = $region17
    $region16: #{tpu_custom_call.1} parent=1 // pred_region
      _
    $region17: #{tpu_custom_call.1} parent=1 // pred_fallthru
      _
    // Predicated region
    $region18: #{tpu_custom_call.1} parent=1 // pred_check
      _
    $region19: #{tpu_custom_call.1} parent=1 // pred_check_branch
      %23 = sbr.rel (0) target = $region21
    $region20: #{tpu_custom_call.1} parent=1 // pred_region
      _
    $region21: #{tpu_custom_call.1} parent=1 // pred_fallthru
      _
    // Predicated region
    $region22: #{tpu_custom_call.1} parent=1 // pred_check
      _
    $region23: #{tpu_custom_call.1} parent=1 // pred_check_branch
      %25 = sbr.rel (0) target = $region25
    $region24: #{tpu_custom_call.1} parent=1 // pred_region
      _
    $region25: #{tpu_custom_call.1} parent=1 // pred_fallthru
      _
    // Predicated region
    $region26: #{tpu_custom_call.1} parent=1 // pred_check
      _
    $region27: #{tpu_custom_call.1} parent=1 // pred_check_branch
      %27 = sbr.rel (0) target = $region29
    $region28: #{tpu_custom_call.1} parent=1 // pred_region
      _
    $region29: #{tpu_custom_call.1} parent=1 // pred_fallthru
      _
    %v28 = vld [vmem:[%s1] sm:$0xff]
    %v29 = vld [vmem:[%s1 + $0x8] sm:$0xff]
    %v30 = vld [vmem:[%s1 + $0x10] sm:$0xff]
    %v31 = vld [vmem:[%s1 + $0x18] sm:$0xff]
    %v32 = vld [vmem:[%s2] sm:$0xff]
    %v33 = vld [vmem:[%s2 + $0x8] sm:$0xff]
    %v34 = vld [vmem:[%s2 + $0x10] sm:$0xff]
    %v35 = vld [vmem:[%s2 + $0x18] sm:$0xff]
    %v36 = vld [vmem:[%s0] sm:$0x1]
    %v37 = vld [vmem:[%s0 + $0x1] sm:$0x1]
    %v38 = vld [vmem:[%s0 + $0x2] sm:$0x1]
    %40 = vset.pattern.permute.xlu0 0
    %41 = vperm.xlu0 %40, %v28
    %v42 = vpop.permute.xlu0 %41
    %45 = vset.pattern.permute.xlu0 0
    %46 = vperm.xlu0 %45, %v29
    %v47 = vpop.permute.xlu0 %46
    %50 = vset.pattern.permute.xlu0 0
    %51 = vperm.xlu0 %50, %v30
    %v52 = vpop.permute.xlu0 %51
    %55 = vset.pattern.permute.xlu0 0
    %56 = vperm.xlu0 %55, %v31
    %v57 = vpop.permute.xlu0 %56
    %v59 = vlaneseq
    %v60 = vshrl.u32 %v59, 7
    %v61 = vsub.s32 0, %v60
    %v62 = vrot.slane %v36, %v61
    %v63 = vmul.f32 %v42, %v62
    %v64 = vmul.f32 %v47, %v62
    %v65 = vmul.f32 %v52, %v62
    %v66 = vmul.f32 %v57, %v62
    %67 = vset.pattern.permute.xlu0 1
    %68 = vperm.xlu0 %67, %v28
    %v69 = vpop.permute.xlu0 %68
    %71 = vset.pattern.permute.xlu0 1
    %72 = vperm.xlu0 %71, %v29
    %v73 = vpop.permute.xlu0 %72
    %75 = vset.pattern.permute.xlu0 1
    %76 = vperm.xlu0 %75, %v30
    %v77 = vpop.permute.xlu0 %76
    %79 = vset.pattern.permute.xlu0 1
    %80 = vperm.xlu0 %79, %v31
    %v81 = vpop.permute.xlu0 %80
    %v83 = vlaneseq
    %v84 = vshrl.u32 %v83, 7
    %v85 = vsub.s32 0, %v84
    %v86 = vrot.slane %v37, %v85
    %v87 = vmul.f32 %v69, %v86
    %v88 = vmul.f32 %v73, %v86
    %v89 = vmul.f32 %v77, %v86
    %v90 = vmul.f32 %v81, %v86
    %v91 = vadd.f32 %v63, %v87
    %v92 = vadd.f32 %v64, %v88
    %v93 = vadd.f32 %v65, %v89
    %v94 = vadd.f32 %v66, %v90
    %95 = vset.pattern.permute.xlu0 2
    %96 = vperm.xlu0 %95, %v28
    %v97 = vpop.permute.xlu0 %96
    %99 = vset.pattern.permute.xlu0 2
    %100 = vperm.xlu0 %99, %v29
    %v101 = vpop.permute.xlu0 %100
    %103 = vset.pattern.permute.xlu0 2
    %104 = vperm.xlu0 %103, %v30
    %v105 = vpop.permute.xlu0 %104
    %107 = vset.pattern.permute.xlu0 2
    %108 = vperm.xlu0 %107, %v31
    %v109 = vpop.permute.xlu0 %108
    %v111 = vlaneseq
    %v112 = vshrl.u32 %v111, 7
    %v113 = vsub.s32 0, %v112
    %v114 = vrot.slane %v38, %v113
    %v115 = vmul.f32 %v97, %v114
    %v116 = vmul.f32 %v101, %v114
    %v117 = vmul.f32 %v105, %v114
    %v118 = vmul.f32 %v109, %v114
    %v119 = vadd.f32 %v91, %v115
    %v120 = vadd.f32 %v92, %v116
    %v121 = vadd.f32 %v93, %v117
    %v122 = vadd.f32 %v94, %v118
    %124 = vset.pattern.permute.xlu0 0
    %125 = vperm.xlu0 %124, %v32
    %v126 = vpop.permute.xlu0 %125
    %129 = vset.pattern.permute.xlu0 0
    %130 = vperm.xlu0 %129, %v33
    %v131 = vpop.permute.xlu0 %130
    %134 = vset.pattern.permute.xlu0 0
    %135 = vperm.xlu0 %134, %v34
    %v136 = vpop.permute.xlu0 %135
    %139 = vset.pattern.permute.xlu0 0
    %140 = vperm.xlu0 %139, %v35
    %v141 = vpop.permute.xlu0 %140
    %v143 = vadd.f32 %v119, %v126
    %v144 = vadd.f32 %v120, %v131
    %v145 = vadd.f32 %v121, %v136
    %v146 = vadd.f32 %v122, %v141
    %v147 = vtanh.pop %v143
    %v148 = vtanh.pop %v144
    %v149 = vtanh.pop %v145
    %v150 = vtanh.pop %v146
    %v151 = vld [vmem:[%s3] sm:$0xff]
    %v152 = vld [vmem:[%s3 + $0x8] sm:$0xff]
    %v153 = vld [vmem:[%s3 + $0x10] sm:$0xff]
    %v154 = vld [vmem:[%s3 + $0x18] sm:$0xff]
    %v155 = vld [vmem:[%s4] sm:$0xff]
    %v156 = vld [vmem:[%s4 + $0x8] sm:$0xff]
    %v157 = vld [vmem:[%s4 + $0x10] sm:$0xff]
    %v158 = vld [vmem:[%s4 + $0x18] sm:$0xff]
    %160 = vset.pattern.permute.xlu0 0
    %161 = vperm.xlu0 %160, %v155
    %v162 = vpop.permute.xlu0 %161
    %165 = vset.pattern.permute.xlu0 0
    %166 = vperm.xlu0 %165, %v156
    %v167 = vpop.permute.xlu0 %166
    %170 = vset.pattern.permute.xlu0 0
    %171 = vperm.xlu0 %170, %v157
    %v172 = vpop.permute.xlu0 %171
    %175 = vset.pattern.permute.xlu0 0
    %176 = vperm.xlu0 %175, %v158
    %v177 = vpop.permute.xlu0 %176
    %vm179 = vcmask 261120
    %v181 = vsel %vm179, %v151, 0
    %v184 = vsel %vm179, %v152, 0
    %v187 = vsel %vm179, %v153, 0
    %v190 = vsel %vm179, %v154, 0
    %192 = vmatprep.subr.mxu0 0.0
    %193 = vmatpush1.msra.mxu0 0.0
    %194 = vmatprep.subr.mxu0 0.0
    %195 = vmatpush1.msra.mxu0 0.0
    %196 = vmatprep.subr.mxu0 0.0
    %197 = vmatpush1.msra.mxu0 0.0
    %198 = vmatprep.subr.mxu0 0.0
    %199 = vmatpush1.msra.mxu0 0.0
    %200 = vmatprep.subr.mxu0 0.0
    %201 = vmatpush1.msra.mxu0 0.0
    %202 = vmatprep.subr.mxu0 0.0
    %203 = vmatpush1.msra.mxu0 0.0
    %204 = vmatprep.subr.mxu0 0.0
    %205 = vmatpush1.msra.mxu0 0.0
    %206 = vmatprep.subr.mxu0 0.0
    %207 = vmatpush1.msra.mxu0 0.0
    %208 = vmatprep.subr.mxu0 0.0
    %209 = vmatpush1.msra.mxu0 0.0
    %210 = vmatprep.subr.mxu0 0.0
    %211 = vmatpush1.msra.mxu0 0.0
    %212 = vmatprep.subr.mxu0 0.0
    %213 = vmatpush1.msra.mxu0 0.0
    %214 = vmatprep.subr.mxu0 0.0
    %215 = vmatpush1.msra.mxu0 0.0
    %216 = vmatprep.subr.mxu0 0.0
    %217 = vmatpush1.msra.mxu0 %v150
    %218 = vmatprep.subr.mxu0 0.0
    %219 = vmatpush1.msra.mxu0 %v149
    %220 = vmatprep.subr.mxu0 0.0
    %221 = vmatpush1.msra.mxu0 %v148
    %222 = vmatprep.subr.mxu0 0.0
    %223 = vmatpush1.msra.mxu0 %v147
    %224 = vmatprep.subr.mxu0 0.0
    %225 = vmatpush2.msra.mxu0 0.0
    %226 = vmatprep.subr.mxu0 0.0
    %227 = vmatpush2.msra.mxu0 0.0
    %228 = vmatprep.subr.mxu0 0.0
    %229 = vmatpush2.msra.mxu0 0.0
    %230 = vmatprep.subr.mxu0 0.0
    %231 = vmatpush2.msra.mxu0 0.0
    %232 = vmatprep.subr.mxu0 0.0
    %233 = vmatpush2.msra.mxu0 0.0
    %234 = vmatprep.subr.mxu0 0.0
    %235 = vmatpush2.msra.mxu0 0.0
    %236 = vmatprep.subr.mxu0 0.0
    %237 = vmatpush2.msra.mxu0 0.0
    %238 = vmatprep.subr.mxu0 0.0
    %239 = vmatpush2.msra.mxu0 0.0
    %240 = vmatprep.subr.mxu0 0.0
    %241 = vmatpush2.msra.mxu0 0.0
    %242 = vmatprep.subr.mxu0 0.0
    %243 = vmatpush2.msra.mxu0 0.0
    %244 = vmatprep.subr.mxu0 0.0
    %245 = vmatpush2.msra.mxu0 0.0
    %246 = vmatprep.subr.mxu0 0.0
    %247 = vmatpush2.msra.mxu0 0.0
    %248 = vmatprep.subr.mxu0 0.0
    %249 = vmatpush2.msra.mxu0 0.0
    %250 = vmatprep.subr.mxu0 0.0
    %251 = vmatpush2.msra.mxu0 0.0
    %252 = vmatprep.subr.mxu0 0.0
    %253 = vmatpush2.msra.mxu0 0.0
    %254 = vmatprep.subr.mxu0 0.0
    %255 = vmatpush2.msra.mxu0 0.0
    %256 = vmatprep.mubr.f32.mxu0 0.0
    %257 = vmatmul.mubr.f32.gmra.mxu0 %v181
    %v258 = vpop.f32.mrf.mxu0
    %v259 = vadd.f32 %v162, %v258
    %v260 = vpop.f32.mrf.mxu0
    %261 = vmatprep.mubr.f32.mxu0 0.0
    %262 = vmatmul.mubr.f32.gmra.mxu0 %v184
    %v263 = vpop.f32.mrf.mxu0
    %v264 = vadd.f32 %v167, %v263
    %v265 = vpop.f32.mrf.mxu0
    %266 = vmatprep.mubr.f32.mxu0 0.0
    %267 = vmatmul.mubr.f32.gmra.mxu0 %v187
    %v268 = vpop.f32.mrf.mxu0
    %v269 = vadd.f32 %v172, %v268
    %v270 = vpop.f32.mrf.mxu0
    %271 = vmatprep.mubr.f32.mxu0 0.0
    %272 = vmatmul.mubr.f32.gmra.mxu0 %v190
    %v273 = vpop.f32.mrf.mxu0
    %v274 = vadd.f32 %v177, %v273
    %v275 = vpop.f32.mrf.mxu0
    %276 = vdwg.mxu0
    %v277 = vtanh.pop %v259
    %v278 = vtanh.pop %v264
    %v279 = vtanh.pop %v269
    %v280 = vtanh.pop %v274
    %s281 = scalar_lea.vmem %s3, 32
    %v282 = vld [vmem:[%s281] sm:$0xff]
    %v283 = vld [vmem:[%s281 + $0x8] sm:$0xff]
    %v284 = vld [vmem:[%s281 + $0x10] sm:$0xff]
    %v285 = vld [vmem:[%s281 + $0x18] sm:$0xff]
    %s286 = scalar_lea.vmem %s4, 32
    %v287 = vld [vmem:[%s286] sm:$0xff]
    %v288 = vld [vmem:[%s286 + $0x8] sm:$0xff]
    %v289 = vld [vmem:[%s286 + $0x10] sm:$0xff]
    %v290 = vld [vmem:[%s286 + $0x18] sm:$0xff]
    %292 = vset.pattern.permute.xlu0 0
    %293 = vperm.xlu0 %292, %v287
    %v294 = vpop.permute.xlu0 %293
    %297 = vset.pattern.permute.xlu0 0
    %298 = vperm.xlu0 %297, %v288
    %v299 = vpop.permute.xlu0 %298
    %302 = vset.pattern.permute.xlu0 0
    %303 = vperm.xlu0 %302, %v289
    %v304 = vpop.permute.xlu0 %303
    %307 = vset.pattern.permute.xlu0 0
    %308 = vperm.xlu0 %307, %v290
    %v309 = vpop.permute.xlu0 %308
    %v312 = vsel %vm179, %v282, 0
    %v315 = vsel %vm179, %v283, 0
    %v318 = vsel %vm179, %v284, 0
    %v321 = vsel %vm179, %v285, 0
    %323 = vmatprep.subr.mxu0 0.0
    %324 = vmatpush1.msra.mxu0 0.0
    %325 = vmatprep.subr.mxu0 0.0
    %326 = vmatpush1.msra.mxu0 0.0
    %327 = vmatprep.subr.mxu0 0.0
    %328 = vmatpush1.msra.mxu0 0.0
    %329 = vmatprep.subr.mxu0 0.0
    %330 = vmatpush1.msra.mxu0 0.0
    %331 = vmatprep.subr.mxu0 0.0
    %332 = vmatpush1.msra.mxu0 0.0
    %333 = vmatprep.subr.mxu0 0.0
    %334 = vmatpush1.msra.mxu0 0.0
    %335 = vmatprep.subr.mxu0 0.0
    %336 = vmatpush1.msra.mxu0 0.0
    %337 = vmatprep.subr.mxu0 0.0
    %338 = vmatpush1.msra.mxu0 0.0
    %339 = vmatprep.subr.mxu0 0.0
    %340 = vmatpush1.msra.mxu0 0.0
    %341 = vmatprep.subr.mxu0 0.0
    %342 = vmatpush1.msra.mxu0 0.0
    %343 = vmatprep.subr.mxu0 0.0
    %344 = vmatpush1.msra.mxu0 0.0
    %345 = vmatprep.subr.mxu0 0.0
    %346 = vmatpush1.msra.mxu0 0.0
    %347 = vmatprep.subr.mxu0 0.0
    %348 = vmatpush1.msra.mxu0 %v280
    %349 = vmatprep.subr.mxu0 0.0
    %350 = vmatpush1.msra.mxu0 %v279
    %351 = vmatprep.subr.mxu0 0.0
    %352 = vmatpush1.msra.mxu0 %v278
    %353 = vmatprep.subr.mxu0 0.0
    %354 = vmatpush1.msra.mxu0 %v277
    %355 = vmatprep.subr.mxu0 0.0
    %356 = vmatpush2.msra.mxu0 0.0
    %357 = vmatprep.subr.mxu0 0.0
    %358 = vmatpush2.msra.mxu0 0.0
    %359 = vmatprep.subr.mxu0 0.0
    %360 = vmatpush2.msra.mxu0 0.0
    %361 = vmatprep.subr.mxu0 0.0
    %362 = vmatpush2.msra.mxu0 0.0
    %363 = vmatprep.subr.mxu0 0.0
    %364 = vmatpush2.msra.mxu0 0.0
    %365 = vmatprep.subr.mxu0 0.0
    %366 = vmatpush2.msra.mxu0 0.0
    %367 = vmatprep.subr.mxu0 0.0
    %368 = vmatpush2.msra.mxu0 0.0
    %369 = vmatprep.subr.mxu0 0.0
    %370 = vmatpush2.msra.mxu0 0.0
    %371 = vmatprep.subr.mxu0 0.0
    %372 = vmatpush2.msra.mxu0 0.0
    %373 = vmatprep.subr.mxu0 0.0
    %374 = vmatpush2.msra.mxu0 0.0
    %375 = vmatprep.subr.mxu0 0.0
    %376 = vmatpush2.msra.mxu0 0.0
    %377 = vmatprep.subr.mxu0 0.0
    %378 = vmatpush2.msra.mxu0 0.0
    %379 = vmatprep.subr.mxu0 0.0
    %380 = vmatpush2.msra.mxu0 0.0
    %381 = vmatprep.subr.mxu0 0.0
    %382 = vmatpush2.msra.mxu0 0.0
    %383 = vmatprep.subr.mxu0 0.0
    %384 = vmatpush2.msra.mxu0 0.0
    %385 = vmatprep.subr.mxu0 0.0
    %386 = vmatpush2.msra.mxu0 0.0
    %387 = vmatprep.mubr.f32.mxu0 0.0
    %388 = vmatmul.mubr.f32.gmra.mxu0 %v312
    %v389 = vpop.f32.mrf.mxu0
    %v390 = vadd.f32 %v294, %v389
    %v391 = vpop.f32.mrf.mxu0
    %392 = vmatprep.mubr.f32.mxu0 0.0
    %393 = vmatmul.mubr.f32.gmra.mxu0 %v315
    %v394 = vpop.f32.mrf.mxu0
    %v395 = vadd.f32 %v299, %v394
    %v396 = vpop.f32.mrf.mxu0
    %397 = vmatprep.mubr.f32.mxu0 0.0
    %398 = vmatmul.mubr.f32.gmra.mxu0 %v318
    %v399 = vpop.f32.mrf.mxu0
    %v400 = vadd.f32 %v304, %v399
    %v401 = vpop.f32.mrf.mxu0
    %402 = vmatprep.mubr.f32.mxu0 0.0
    %403 = vmatmul.mubr.f32.gmra.mxu0 %v321
    %v404 = vpop.f32.mrf.mxu0
    %v405 = vadd.f32 %v309, %v404
    %v406 = vpop.f32.mrf.mxu0
    %407 = vdwg.mxu0
    %v408 = vtanh.pop %v390
    %v409 = vtanh.pop %v395
    %v410 = vtanh.pop %v400
    %v411 = vtanh.pop %v405
    %v412 = vld [vmem:[%s5] sm:$0x1]
    %s413 = sld [smem:[#allocation2]]
    %v414 = vstv %s413
    %v416 = vsel %vm179, %v412, 0
    %418 = vmatprep.subr.mxu0 0.0
    %419 = vmatpush1.msra.mxu0 0.0
    %420 = vmatprep.subr.mxu0 0.0
    %421 = vmatpush1.msra.mxu0 0.0
    %422 = vmatprep.subr.mxu0 0.0
    %423 = vmatpush1.msra.mxu0 0.0
    %424 = vmatprep.subr.mxu0 0.0
    %425 = vmatpush1.msra.mxu0 0.0
    %426 = vmatprep.subr.mxu0 0.0
    %427 = vmatpush1.msra.mxu0 0.0
    %428 = vmatprep.subr.mxu0 0.0
    %429 = vmatpush1.msra.mxu0 0.0
    %430 = vmatprep.subr.mxu0 0.0
    %431 = vmatpush1.msra.mxu0 0.0
    %432 = vmatprep.subr.mxu0 0.0
    %433 = vmatpush1.msra.mxu0 0.0
    %434 = vmatprep.subr.mxu0 0.0
    %435 = vmatpush1.msra.mxu0 0.0
    %436 = vmatprep.subr.mxu0 0.0
    %437 = vmatpush1.msra.mxu0 0.0
    %438 = vmatprep.subr.mxu0 0.0
    %439 = vmatpush1.msra.mxu0 0.0
    %440 = vmatprep.subr.mxu0 0.0
    %441 = vmatpush1.msra.mxu0 0.0
    %442 = vmatprep.subr.mxu0 0.0
    %443 = vmatpush1.msra.mxu0 %v411
    %444 = vmatprep.subr.mxu0 0.0
    %445 = vmatpush1.msra.mxu0 %v410
    %446 = vmatprep.subr.mxu0 0.0
    %447 = vmatpush1.msra.mxu0 %v409
    %448 = vmatprep.subr.mxu0 0.0
    %449 = vmatpush1.msra.mxu0 %v408
    %450 = vmatprep.subr.mxu0 0.0
    %451 = vmatpush2.msra.mxu0 0.0
    %452 = vmatprep.subr.mxu0 0.0
    %453 = vmatpush2.msra.mxu0 0.0
    %454 = vmatprep.subr.mxu0 0.0
    %455 = vmatpush2.msra.mxu0 0.0
    %456 = vmatprep.subr.mxu0 0.0
    %457 = vmatpush2.msra.mxu0 0.0
    %458 = vmatprep.subr.mxu0 0.0
    %459 = vmatpush2.msra.mxu0 0.0
    %460 = vmatprep.subr.mxu0 0.0
    %461 = vmatpush2.msra.mxu0 0.0
    %462 = vmatprep.subr.mxu0 0.0
    %463 = vmatpush2.msra.mxu0 0.0
    %464 = vmatprep.subr.mxu0 0.0
    %465 = vmatpush2.msra.mxu0 0.0
    %466 = vmatprep.subr.mxu0 0.0
    %467 = vmatpush2.msra.mxu0 0.0
    %468 = vmatprep.subr.mxu0 0.0
    %469 = vmatpush2.msra.mxu0 0.0
    %470 = vmatprep.subr.mxu0 0.0
    %471 = vmatpush2.msra.mxu0 0.0
    %472 = vmatprep.subr.mxu0 0.0
    %473 = vmatpush2.msra.mxu0 0.0
    %474 = vmatprep.subr.mxu0 0.0
    %475 = vmatpush2.msra.mxu0 0.0
    %476 = vmatprep.subr.mxu0 0.0
    %477 = vmatpush2.msra.mxu0 0.0
    %478 = vmatprep.subr.mxu0 0.0
    %479 = vmatpush2.msra.mxu0 0.0
    %480 = vmatprep.subr.mxu0 0.0
    %481 = vmatpush2.msra.mxu0 0.0
    %482 = vmatprep.mubr.f32.mxu0 0.0
    %483 = vmatmul.mubr.f32.gmra.mxu0 %v416
    %v484 = vpop.f32.mrf.mxu0
    %v485 = vadd.f32 %v414, %v484
    %v486 = vpop.f32.mrf.mxu0
    %487 = vdwg.mxu0
    %488 = vst [vmem:[#allocation3] sm:$0x1] %v485
    // Predicated region
    $region30: #{tpu_custom_call.1} parent=1 // pred_check
      _
    $region31: #{tpu_custom_call.1} parent=1 // pred_check_branch
      %490 = sbr.rel (0) target = $region33
    $region32: #{tpu_custom_call.1} parent=1 // pred_region
      %s492 = ssub.s32 16, 16
      %493 = vsyncadd [#allocation4], %s492
      %s495 = sshll.u32 [#allocation3], 4
      %s496 = int_to_ptr.vmem [resolvable:$true] %s495
      %498 = dma.vmem_to_hbm [thread:$0]  %s496, 16, %s7, [#allocation4]
    $region33: #{tpu_custom_call.1} parent=1 // pred_fallthru
      _
    // Predicated region
    $region34: #{tpu_custom_call.1} parent=1 // pred_check
      _
    $region35: #{tpu_custom_call.1} parent=1 // pred_check_branch
      %500 = sbr.rel (0) target = $region37
    $region36: #{tpu_custom_call.1} parent=1 // pred_region
      %501 = dma.done [#allocation4], 16
    $region37: #{tpu_custom_call.1} parent=1 // pred_fallthru
      _
    %502 = vsyncpa [#allocation4], 1

</llo_original>
